<compile_context>
chip_gen: v6e
topology: v6e:2x2x1
jax: 0.10.0
libtpu: 0.0.40
codegen_flags: <defaults>
</compile_context>

<pallas_src>
import functools

import jax
import jax.numpy as jnp
from jax import lax
from jax.experimental import pallas as pl
from jax.experimental.pallas import tpu as pltpu


_LANE = 128
_VMEM_FALLBACK_BYTES = 64 << 20       # assume the smallest generation (v7x) if query fails


def _round_up(x, m):
    return ((x + m - 1) // m) * m


def _cdiv(a, b):
    return -(-a // b)


_VMEM_CAP_CACHE = []


def _tpu_vmem_capacity_bytes():
    """Physical VMEM per core (128 MiB v5e/v6e, 64 MiB v7x); robust fallback."""
    if not _VMEM_CAP_CACHE:
        cap = _VMEM_FALLBACK_BYTES
        try:
            cap = int(pltpu.get_tpu_info().vmem_capacity_bytes)
        except Exception:       # query unavailable on this jax/device combo
            pass
        _VMEM_CAP_CACHE.append(cap)
    return _VMEM_CAP_CACHE[0]


def _vmem_limit_bytes():
    # ~75% of physical VMEM (48 MiB on v7x, 96 MiB on v5e/v6e) leaves headroom
    # for compiler-internal scratch.
    return min((_tpu_vmem_capacity_bytes() * 3) // 4, 100 << 20)


def _plan(c, n, block_bytes=None):
    """Choose (core_split, steps_per_core, tn) for streaming M = [C, N] over N.

    Blocks target a few MiB so the ~0.35us per-grid-step fixed cost is
    amortized and the (memory-bound) kernel stays near the HBM roofline; N is
    split evenly into 128-multiple chunks (no near-empty zero tail).  C is
    never padded toward the MXU size: at small C the kernel is HBM-bound and
    channel padding would be pure wasted bandwidth.
    """
    col_bytes = c * 4                       # one f32 lane column of M
    total_bytes = n * col_bytes
    gram_bytes = c * c * 4

    if block_bytes is None:
        # Generation-aware target: v5e/v6e (128 MiB VMEM) afford larger blocks;
        # v7x (64 MiB) gets a smaller target plus a hard budget cap so
        # 2 x block + Gram buffers stay well inside the scoped limit.
        pref = (8 << 20) if _tpu_vmem_capacity_bytes() >= (128 << 20) else (6 << 20)
        budget = max(1 << 20,
                     (_vmem_limit_bytes() - 4 * gram_bytes - (4 << 20)) // 2)
        block_bytes = min(pref, budget)

    if total_bytes <= block_bytes or n <= _LANE:
        # Single block spanning the whole N axis (legal even if N % 128 != 0).
        return 1, 1, n

    tn_target = max(_LANE, (block_bytes // col_bytes) // _LANE * _LANE)
    nsteps = _cdiv(n, tn_target)
    tn = _round_up(_cdiv(n, nsteps), _LANE)      # even split, multiple of 128
    nsteps = _cdiv(n, tn)
    split = 2 if nsteps >= 2 else 1              # use both TensorCores on v7x
    steps_per_core = _cdiv(nsteps, split)
    return split, steps_per_core, tn


# ---------------------------------------------------------------------------
# Kernel
# ---------------------------------------------------------------------------
def _gram_partial_kernel(m_ref, out_ref, *, n, tn, steps_per_core, ragged,
                         mxu_dtype):
    """Accumulate one core's partial (unnormalized) Gram into out_ref.

    out_ref has a constant block index along the reduction axis, so it stays
    resident in VMEM and doubles as the accumulator (no scratch buffer).
    """
    k = pl.program_id(1)                        # reduction step within this core

    @pl.when(k == 0)
    def _():
        out_ref[...] = jnp.zeros_like(out_ref)

    m = m_ref[...]                               # [C, tn] f32 streamed from HBM
    if ragged:
        # Zero out-of-range lanes of the ragged tail chunk (and any fully
        # out-of-range duplicate chunk the index_map clamped back in-bounds).
        g = pl.program_id(0) * steps_per_core + k          # logical chunk index
        lane = lax.broadcasted_iota(jnp.int32, m.shape, 1)
        m = jnp.where(g * tn + lane < n, m, 0.0)

    mm = m.astype(mxu_dtype)                     # bf16 MXU operands by default
    # Contract the lane axis of both operands (M @ M^T, flash-attention style):
    # lowers to an MXU matmul with a transposed-RHS feed, no per-step XLU
    # transpose of the [C, tn] tile (sanity-check with pl.lower_as_mlir).
    out_ref[...] += lax.dot_general(
        mm, mm,
        dimension_numbers=(((1,), (1,)), ((), ())),
        preferred_element_type=jnp.float32,
    )


# ---------------------------------------------------------------------------
# Wrappers
# ---------------------------------------------------------------------------
def _gram_partials(matrix_f32, mxu_dtype, block_bytes=None):
    """matrix_f32: [C, N] f32 -> [split, C, C] f32 unnormalized partial Grams."""
    c, n = matrix_f32.shape
    split, steps_per_core, tn = _plan(c, n, block_bytes)
    nsteps = _cdiv(n, tn)

    if split * steps_per_core > nsteps:
        # Odd chunk count: the last grid step of the last core would start past
        # the array end; clamp its DMA to the last valid chunk (the in-kernel
        # lane mask zeroes its contribution).
        last = nsteps - 1

        def in_idx(core, k):
            return (0, jnp.minimum(core * steps_per_core + k, last))
    else:
        def in_idx(core, k):
            return (0, core * steps_per_core + k)

    kernel = functools.partial(
        _gram_partial_kernel,
        n=n, tn=tn, steps_per_core=steps_per_core,
        ragged=(split * steps_per_core * tn != n),
        mxu_dtype=mxu_dtype,
    )

    return pl.pallas_call(
        kernel,
        out_shape=jax.ShapeDtypeStruct((split, c, c), jnp.float32),
        grid_spec=pltpu.PrefetchScalarGridSpec(
            num_scalar_prefetch=0,
            grid=(split, steps_per_core),         # (parallel cores, N reduction)
            # TODO(synk): sweep pipeline_mode=pl.Buffered(3) on the input spec
            # for large (compute-bound) C once per-generation VMEM headroom is
            # confirmed.
            in_specs=[pl.BlockSpec((c, tn), in_idx)],
            out_specs=pl.BlockSpec((None, c, c), lambda core, k: (core, 0, 0)),
        ),
        compiler_params=pltpu.CompilerParams(
            dimension_semantics=("parallel", "arbitrary"),
            vmem_limit_bytes=_vmem_limit_bytes(),
        ),
    )(matrix_f32)


def _gram_from_features(feat, mxu_dtype, block_bytes=None):
    """feat: [1, C, H, W] -> normalized Gram [C, C] f32 (divided by C*H*W)."""
    _, c, h, w = feat.shape
    n = h * w
    m = feat.reshape(c, n).astype(jnp.float32)   # free reshape / no-op cast under jit
    split, _, tn = _plan(c, n, block_bytes)
    del split
    if tn != n and c % 8:
        # Rare fallback (unaligned channel count + feature map too large for a
        # single streamed block): pad C to the f32 sublane multiple so tiled
        # BlockSpecs stay (8,128)-aligned; zero rows add nothing to the Gram.
        m = jnp.pad(m, ((0, _round_up(c, 8) - c), (0, 0)))
    partials = _gram_partials(m, mxu_dtype, block_bytes)
    gram = jnp.sum(partials, axis=0)[:c, :c]
    return gram * (1.0 / float(c * n))


@functools.partial(jax.jit, static_argnames=("mxu_dtype", "block_bytes"))
def _gram_jit(feat, *, mxu_dtype, block_bytes=None):
    return _gram_from_features(feat, mxu_dtype, block_bytes)


@functools.partial(jax.jit, static_argnames=("mxu_dtype", "block_bytes"))
def _style_loss_jit(feat, target_gram, *, mxu_dtype, block_bytes=None):
    # The MSE epilogue is a tiny [C, C] op; it fuses into one XLA pass here
    # instead of costing the kernel a double-buffered target operand + scratch.
    gram = _gram_from_features(feat, mxu_dtype, block_bytes)
    return jnp.mean((gram - target_gram) ** 2)


class StyleLossLayer:
    """JAX/Pallas equivalent of the PyTorch StyleLossLayer (identity + loss).

    `mxu_dtype` controls the matmul-operand precision: bf16 (default) for
    speed at compute-bound C, jnp.float32 for strict f32 numerics.
    """

    def __init__(self, target, mxu_dtype=jnp.bfloat16):
        assert target.ndim == 4 and target.shape[0] == 1, (
            f"Input tensor has to be [1, C, H, W], but {target.shape} met!")
        self._c = target.shape[1]
        self._mxu_dtype = mxu_dtype
        target = jnp.asarray(target)
        self.target_gram_matrix = lax.stop_gradient(
            _gram_jit(target, mxu_dtype=mxu_dtype))
        self.loss = jnp.asarray(0.0, jnp.float32)

    def __call__(self, inp):
        assert inp.ndim == 4 and inp.shape[0] == 1, (
            f"Input tensor has to be [1, C, H, W], but {inp.shape} met!")
        assert inp.shape[1] == self._c, "channel count must match the target"
        # TODO(synk): mutable Python-side `self.loss` mirrors the PyTorch side
        # effect but is not jit/grad-transparent (no custom VJP through the loss).
        self.loss = _style_loss_jit(jnp.asarray(inp), self.target_gram_matrix,
                                    mxu_dtype=self._mxu_dtype)
        return inp   # identity, exactly like the PyTorch module


if __name__ == "__main__":
    key = jax.random.PRNGKey(0)
    k_tgt, k_inp, k_big = jax.random.split(key, 3)

    # Small [1, C, H, W] feature maps.
    target_feat = jax.random.normal(k_tgt, (1, 4, 16, 16), dtype=jnp.float32)
    inp = jax.random.normal(k_inp, (1, 4, 16, 16), dtype=jnp.float32)

    layer = StyleLossLayer(target_feat)          # bf16 MXU operands (default)
    out = layer(inp)
    jax.block_until_ready(out)
    loss = jax.block_until_ready(layer.loss)

    def ref_gram(t, dt):
        _, c, h, w = t.shape
        m = t.reshape(c, h * w).astype(dt).astype(jnp.float32)
        return (m @ m.T) / float(c * h * w)

    assert out is inp, "forward must return the input unchanged"

    # Tight check against a reference with identically bf16-quantized operands.
    ref_loss_bf16 = jnp.mean(
        (ref_gram(inp, jnp.bfloat16) - ref_gram(target_feat, jnp.bfloat16)) ** 2)
    assert jnp.allclose(loss, ref_loss_bf16, rtol=1e-3, atol=1e-6), (loss, ref_loss_bf16)

    # Loose sanity check against the full-f32 semantics of the PyTorch module.
    ref_loss_f32 = jnp.mean(
        (ref_gram(inp, jnp.float32) - ref_gram(target_feat, jnp.float32)) ** 2)
    assert jnp.allclose(loss, ref_loss_f32, rtol=5e-2, atol=1e-4), (loss, ref_loss_f32)

    # Exercise the multi-chunk / ragged-tail / dual-TensorCore-split / C-pad
    # fallback path on a small array by forcing a tiny streamed-block size,
    # with f32 MXU operands (the explicit precision opt-in).
    feat6 = jax.random.normal(k_big, (1, 6, 24, 24), dtype=jnp.float32)
    g_kernel = jax.block_until_ready(
        _gram_jit(feat6, mxu_dtype=jnp.float32, block_bytes=4096))
    g_ref = ref_gram(feat6, jnp.float32)
    assert jnp.allclose(g_kernel, g_ref, rtol=1e-2, atol=1e-4), (g_kernel, g_ref)

    print("KERNEL_OK")
</pallas_src>

<mosaic_0001>
module attributes {stable_mosaic.version = 11 : i64} {
  func.func @_gram_partial_kernel(%arg0: i32, %arg1: i32, %arg2: memref<4x256xf32, #tpu.memory_space<vmem>>, %arg3: memref<1x4x4xf32, #tpu.memory_space<vmem>>) attributes {dimension_semantics = [#tpu.dimension_semantics<parallel>, #tpu.dimension_semantics<arbitrary>], iteration_bounds = array<i64: 1, 1>, scalar_prefetch = 0 : i64, scratch_operands = 0 : i64, tpu.core_type = #tpu.core_type<tc>, window_params = [{transform_indices = @transform_0, window_bounds = array<i64: 4, 256>}, {transform_indices = @transform_1, window_bounds = array<i64: 1, 4, 4>}]} {
    %c0_i32 = arith.constant 0 : i32
    %0 = arith.cmpi eq, %arg1, %c0_i32 : i32
    %1 = arith.extui %0 : i1 to i32
    %c0_i32_0 = arith.constant 0 : i32
    %2 = arith.cmpi ne, %1, %c0_i32_0 : i32
    scf.if %2 {
      %cst_8 = arith.constant 0.000000e+00 : f32
      %12 = vector.broadcast %cst_8 : f32 to vector<4x4xf32>
      %c0_9 = arith.constant 0 : index
      %c0_10 = arith.constant 0 : index
      %c0_11 = arith.constant 0 : index
      %13 = vector.load %arg3[%c0_9, %c0_10, %c0_11] : memref<1x4x4xf32, #tpu.memory_space<vmem>>, vector<1x4x4xf32>
      %14 = vector.shape_cast %13 : vector<1x4x4xf32> to vector<4x4xf32>
      %15 = vector.shape_cast %12 : vector<4x4xf32> to vector<1x4x4xf32>
      tpu.vector_store %arg3[%c0_9, %c0_10, %c0_11], %15 {strides = array<i32>} : memref<1x4x4xf32, #tpu.memory_space<vmem>>, vector<1x4x4xf32>,
    } else {
    }
    %c0 = arith.constant 0 : index
    %c0_1 = arith.constant 0 : index
    %3 = vector.load %arg2[%c0, %c0_1] : memref<4x256xf32, #tpu.memory_space<vmem>>, vector<4x256xf32>
    %4 = arith.truncf %3 : vector<4x256xf32> to vector<4x256xbf16>
    %c0_2 = arith.constant 0 : index
    %c0_3 = arith.constant 0 : index
    %c0_4 = arith.constant 0 : index
    %5 = vector.load %arg3[%c0_2, %c0_3, %c0_4] : memref<1x4x4xf32, #tpu.memory_space<vmem>>, vector<1x4x4xf32>
    %6 = vector.shape_cast %5 : vector<1x4x4xf32> to vector<4x4xf32>
    %cst = arith.constant dense<0.000000e+00> : vector<4x4xf32>
    %7 = tpu.matmul %4, %4, %cst {dimension_numbers = #tpu.dot_dimension_numbers<[1], [1], [0], [0], [0, 0, 1, 0], [], []>} : vector<4x256xbf16>, vector<4x256xbf16>, vector<4x4xf32> -> vector<4x4xf32>
    %8 = arith.addf %6, %7 : vector<4x4xf32>
    %c0_5 = arith.constant 0 : index
    %c0_6 = arith.constant 0 : index
    %c0_7 = arith.constant 0 : index
    %9 = vector.load %arg3[%c0_5, %c0_6, %c0_7] : memref<1x4x4xf32, #tpu.memory_space<vmem>>, vector<1x4x4xf32>
    %10 = vector.shape_cast %9 : vector<1x4x4xf32> to vector<4x4xf32>
    %11 = vector.shape_cast %8 : vector<4x4xf32> to vector<1x4x4xf32>
    tpu.vector_store %arg3[%c0_5, %c0_6, %c0_7], %11 {strides = array<i32>} : memref<1x4x4xf32, #tpu.memory_space<vmem>>, vector<1x4x4xf32>,
    return
  }
  func.func @transform_0(%arg0: i32, %arg1: i32) -> (i32, i32) {
    %c1_i32 = arith.constant 1 : i32
    %0 = arith.muli %arg0, %c1_i32 : i32
    %1 = arith.addi %0, %arg1 : i32
    %c0_i32 = arith.constant 0 : i32
    %c0_i32_0 = arith.constant 0 : i32
    return %c0_i32, %1 : i32, i32
  }
  func.func @transform_1(%arg0: i32, %arg1: i32) -> (i32, i32, i32) {
    %c0_i32 = arith.constant 0 : i32
    %c0_i32_0 = arith.constant 0 : i32
    %c0_i32_1 = arith.constant 0 : i32
    return %arg0, %c0_i32, %c0_i32_0 : i32, i32, i32
  }
}

</mosaic_0001>

<llo_original>
// kernel: _gram_jit.1
$region0: #{_gram_jit.1}
  #allocation0 [shape = 'u32[]', space=smem, size = 0x4, offset = 0x4, fixed_abs, tag = 'smem constant byte address 0x4 - core index']
  #allocation1 [shape = 'u32[144,128]{1,0:T(1,128)}', space=vmem, size = 0x12000, scoped, tag = 'internal scratch']
  %s0 = inlined_call_operand.vmem [shape: f32[4,256], index: 0, kind: input, shape index: {}]
  %s1 = inlined_call_operand.vmem [shape: f32[1,4,4], index: 1, kind: output, shape index: {}]
  %s2 = sld [smem:[#allocation0]]
  $region18: #{_gram_jit.1} parent=0
    _
  %s4 = ssub.s32 1, %s2
  %s5 = scalar_select 0, %s4, %s2
  // Predicated region
  $region2: #{_gram_jit.1} parent=0 // pred_check
    _
  $region3: #{_gram_jit.1} parent=0 // pred_check_branch
    %7 = sbr.rel (0) target = $region5
  $region4: #{_gram_jit.1} parent=0 // pred_region
    %s8 = sadd.s32 0, 0
    %s9 = smul.u32 2, %s8
    %p10 = scmp.lt.s32.totalorder %s9, 1
    %s11 = scalar_select %p10, %s9, 1
    %s12 = smul.addr %s11, 4
    %s13 = scalar_lea.vmem %s0, %s12
    %s14 = sadd.s32 0, 0
    %s15 = smul.u32 2, %s14
  $region5: #{_gram_jit.1} parent=0 // pred_fallthru
    _
  %s16 = sadd.s32 0, 0
  %s17 = smul.u32 2, %s16
  %p18 = scmp.lt.s32.totalorder %s17, 1
  %s19 = scalar_select %p18, %s17, 1
  %s20 = smul.addr %s19, 4
  %s21 = scalar_lea.vmem %s0, %s20
  %s22 = sadd.s32 0, 0
  %s23 = smul.u32 2, %s22
  %p24 = scmp.lt.s32.totalorder %s23, 1
  %s25 = scalar_select %p24, %s23, 1
  %s26 = smul.addr %s25, 4
  %s27 = scalar_lea.vmem %s0, %s26
  %s28 = sadd.s32 0, 0
  %s29 = smul.u32 2, %s28
  %p31 = scmp.eq.s32.totalorder 0, 0
  // Predicated region
  $region6: #{_gram_jit.1} parent=0 // pred_check
    %p32 = pneg %p31
  $region7: #{_gram_jit.1} parent=0 // pred_check_branch
    %34 = sbr.rel (%p32) target = $region9
  $region8: #{_gram_jit.1} parent=0 // pred_region
    %vm35 = vcmask 27648
    %36 = vst.msk [vmem:[%s1] sm:$0xf] %vm35, 0.0
  $region9: #{_gram_jit.1} parent=0 // pred_fallthru
    _
  %v37 = vld [vmem:[%s27] sm:$0xff]
  %v39 = vcombine.high %v37, %v37
  %v41 = vpack.c.bf16 %v37, %v37
  %v42 = vpack.c.bf16 %v39, %v39
  %v43 = vld [vmem:[%s1] sm:$0xf]
  %44 = vmatprep.subr.bf16.mxu0 0
  %45 = vmatpush1.bf16.xpose.msra.mxu0 0
  %46 = vmatprep.subr.bf16.mxu0 0
  %47 = vmatpush1.bf16.xpose.msra.mxu0 0
  %48 = vmatprep.subr.bf16.mxu0 0
  %49 = vmatpush1.bf16.xpose.msra.mxu0 0
  %50 = vmatprep.subr.bf16.mxu0 0
  %51 = vmatpush1.bf16.xpose.msra.mxu0 0
  %52 = vmatprep.subr.bf16.mxu0 0
  %53 = vmatpush1.bf16.xpose.msra.mxu0 0
  %54 = vmatprep.subr.bf16.mxu0 0
  %55 = vmatpush1.bf16.xpose.msra.mxu0 0
  %56 = vmatprep.subr.bf16.mxu0 0
  %57 = vmatpush1.bf16.xpose.msra.mxu0 0
  %58 = vmatprep.subr.bf16.mxu0 %v42
  %59 = vmatpush1.bf16.xpose.msra.mxu0 %v41
  %60 = vmatprep.subr.bf16.mxu0 0
  %61 = vmatpush2.bf16.xpose.msra.mxu0 0
  %62 = vmatprep.subr.bf16.mxu0 0
  %63 = vmatpush2.bf16.xpose.msra.mxu0 0
  %64 = vmatprep.subr.bf16.mxu0 0
  %65 = vmatpush2.bf16.xpose.msra.mxu0 0
  %66 = vmatprep.subr.bf16.mxu0 0
  %67 = vmatpush2.bf16.xpose.msra.mxu0 0
  %68 = vmatprep.subr.bf16.mxu0 0
  %69 = vmatpush2.bf16.xpose.msra.mxu0 0
  %70 = vmatprep.subr.bf16.mxu0 0
  %71 = vmatpush2.bf16.xpose.msra.mxu0 0
  %72 = vmatprep.subr.bf16.mxu0 0
  %73 = vmatpush2.bf16.xpose.msra.mxu0 0
  %74 = vmatprep.subr.bf16.mxu0 0
  %75 = vmatpush2.bf16.xpose.msra.mxu0 0
  %76 = vmatprep.mubr.bf16.mxu0 %v42
  %77 = vmatmul.mubr.bf16.gmra.mxu0 %v41
  %v78 = vpop.f32.mrf.mxu0
  %v79 = vadd.f32 0.0, %v78
  %v80 = vpop.f32.mrf.mxu0
  %v81 = vpop.f32.mrf.mxu0
  %v82 = vpop.f32.mrf.mxu0
  %83 = vdwg.mxu0
  %v84 = vadd.f32 %v43, %v79
  %vm85 = vcmask 27648
  %86 = vst.msk [vmem:[%s1] sm:$0xf] %vm85, %v84
  // Predicated region
  $region10: #{_gram_jit.1} parent=0 // pred_check
    _
  $region11: #{_gram_jit.1} parent=0 // pred_check_branch
    %88 = sbr.rel (0) target = $region13
  $region12: #{_gram_jit.1} parent=0 // pred_region
    _
  $region13: #{_gram_jit.1} parent=0 // pred_fallthru
    _
  // Predicated region
  $region14: #{_gram_jit.1} parent=0 // pred_check
    _
  $region15: #{_gram_jit.1} parent=0 // pred_check_branch
    %90 = sbr.rel (0) target = $region17
  $region16: #{_gram_jit.1} parent=0 // pred_region
    _
  $region17: #{_gram_jit.1} parent=0 // pred_fallthru
    _

</llo_original>
